<compile_context>
chip_gen: v7x
topology: tpu7x:2x2x1
jax: 0.10.0
libtpu: 0.0.40
codegen_flags: <defaults>
</compile_context>

<pallas_src>
import functools

import jax
import jax.numpy as jnp
from jax.experimental import pallas as pl
from jax.experimental.pallas import tpu as pltpu


def _gcn_kernel(x_ref, l_ref, w_ref, b_ref, o_ref, *, kp1):
    """Fused Laplacian-GCN forward, fully unrolled over the k hops."""
    l_mat = l_ref[...]
    p = x_ref[...]
    powers = [p]                       # P_0 = X  (matrix_power(L, 0) = I)
    for _ in range(kp1 - 1):           # P_k = L @ P_{k-1}
        p = jnp.dot(l_mat, p, preferred_element_type=jnp.float32)
        powers.append(p)

    # One wide contraction instead of (K+1) narrow ones:
    #   sum_k P_k @ W_k == concat_k(P_k) @ concat_k(W_k)
    p_all = jnp.concatenate(powers, axis=-1)                # [N, (K+1)*D_in]
    y = jnp.dot(p_all, w_ref[...],
                preferred_element_type=jnp.float32) + b_ref[...]
    o_ref[...] = jnp.maximum(y, 0.0).astype(o_ref.dtype)    # ReLU


def laplacian_gcn_parallel(X, L, W_stack, b_stack):
    """X: [N, D_in], L: [N, N],
    W_stack: [K+1, D_in, D_out] (PyTorch weights pre-transposed per hop),
    b_stack: [K+1, D_out]."""
    N, D_in = X.shape
    Kp1, _, D_out = W_stack.shape

    # Fuse the (K+1) Linear layers: stack the (already transposed) weights
    # along the contraction axis; pre-sum the biases (added once in-kernel).
    W_cat = W_stack.reshape(Kp1 * D_in, D_out)
    b_sum = jnp.sum(b_stack, axis=0).reshape(1, D_out)

    # Explicit VMEM budget from the actual resident footprint (with slack),
    # capped to stay comfortably under v7x's 64 MiB physical VMEM.
    itemsize = 4
    footprint = itemsize * (
        N * D_in + N * N + Kp1 * D_in * D_out + D_out        # inputs
        + N * Kp1 * D_in + 2 * N * D_out                     # P_all + output
    )
    vmem_limit = int(min(max(2 * footprint + (2 << 20), 8 << 20), 48 << 20))

    vmem = pltpu.MemorySpace.VMEM
    return pl.pallas_call(
        functools.partial(_gcn_kernel, kp1=Kp1),
        out_shape=jax.ShapeDtypeStruct((N, D_out), jnp.float32),
        in_specs=[
            pl.BlockSpec(memory_space=vmem),   # X        [N, D_in]
            pl.BlockSpec(memory_space=vmem),   # L        [N, N]
            pl.BlockSpec(memory_space=vmem),   # W_cat    [(K+1)*D_in, D_out]
            pl.BlockSpec(memory_space=vmem),   # b_sum    [1, D_out]
        ],
        out_specs=pl.BlockSpec(memory_space=vmem),
        compiler_params=pltpu.CompilerParams(
            vmem_limit_bytes=vmem_limit,
        ),
    )(X, L, W_cat, b_sum)


def _reference(X, L, W_stack, b_stack):
    """Pure-JAX reference matching the PyTorch forward."""
    Kp1 = W_stack.shape[0]
    N = X.shape[0]
    acc = jnp.zeros((N, W_stack.shape[2]), jnp.float32)
    P = X.astype(jnp.float32)
    Lf = L.astype(jnp.float32)
    for k in range(Kp1):
        if k > 0:
            P = Lf @ P
        acc = acc + P @ W_stack[k] + b_stack[k]
    return jnp.maximum(acc, 0.0)


if __name__ == "__main__":
    # Small shapes consistent with the module: N nodes, input_dim, output_dim, k hops.
    N, D_in, D_out, K = 16, 32, 32, 2

    key = jax.random.PRNGKey(0)
    kx, kl, kw, kb = jax.random.split(key, 4)

    X = jax.random.normal(kx, (N, D_in), dtype=jnp.float32)

    # Build a symmetric-normalized-Laplacian-like matrix deterministically.
    A = (jax.random.uniform(kl, (N, N)) > 0.7).astype(jnp.float32)
    A = jnp.maximum(A, A.T) * (1.0 - jnp.eye(N, dtype=jnp.float32))
    deg = jnp.sum(A, axis=1)
    d_inv_sqrt = jnp.where(deg > 0, 1.0 / jnp.sqrt(deg), 0.0)
    L = jnp.eye(N, dtype=jnp.float32) - (d_inv_sqrt[:, None] * A * d_inv_sqrt[None, :])

    # Deterministic parameter init for the (K+1) Linear layers.
    # PyTorch Linear weight is [D_out, D_in]; we pre-transpose to [D_in, D_out].
    W_stack = 0.1 * jax.random.normal(kw, (K + 1, D_in, D_out), dtype=jnp.float32)
    b_stack = 0.01 * jax.random.normal(kb, (K + 1, D_out), dtype=jnp.float32)

    out = laplacian_gcn_parallel(X, L, W_stack, b_stack)
    out = jax.block_until_ready(out)

    ref = _reference(X, L, W_stack, b_stack)
    assert out.shape == (N, D_out)
    assert jnp.allclose(out, ref, atol=1e-4, rtol=1e-4), "mismatch vs reference"

    print("KERNEL_OK")
</pallas_src>

<mosaic_0001>
module attributes {stable_mosaic.version = 11 : i64} {
  func.func @_gcn_kernel(%arg0: memref<16x32xf32, #tpu.memory_space<vmem>>, %arg1: memref<16x16xf32, #tpu.memory_space<vmem>>, %arg2: memref<96x32xf32, #tpu.memory_space<vmem>>, %arg3: memref<1x32xf32, #tpu.memory_space<vmem>>, %arg4: memref<16x32xf32, #tpu.memory_space<vmem>>) attributes {dimension_semantics = [], scalar_prefetch = 0 : i64, scratch_operands = 0 : i64, tpu.core_type = #tpu.core_type<tc>} {
    %c0 = arith.constant 0 : index
    %c0_0 = arith.constant 0 : index
    %0 = vector.load %arg1[%c0, %c0_0] : memref<16x16xf32, #tpu.memory_space<vmem>>, vector<16x16xf32>
    %c0_1 = arith.constant 0 : index
    %c0_2 = arith.constant 0 : index
    %1 = vector.load %arg0[%c0_1, %c0_2] : memref<16x32xf32, #tpu.memory_space<vmem>>, vector<16x32xf32>
    %cst = arith.constant dense<0.000000e+00> : vector<16x32xf32>
    %2 = tpu.matmul %0, %1, %cst {dimension_numbers = #tpu.dot_dimension_numbers<[1], [0], [0], [1], [0, 0, 1, 1], [], []>} : vector<16x16xf32>, vector<16x32xf32>, vector<16x32xf32> -> vector<16x32xf32>
    %cst_3 = arith.constant dense<0.000000e+00> : vector<16x32xf32>
    %3 = tpu.matmul %0, %2, %cst_3 {dimension_numbers = #tpu.dot_dimension_numbers<[1], [0], [0], [1], [0, 0, 1, 1], [], []>} : vector<16x16xf32>, vector<16x32xf32>, vector<16x32xf32> -> vector<16x32xf32>
    %4 = tpu.concatenate %1, %2, %3 in 1 : vector<16x32xf32>, vector<16x32xf32>, vector<16x32xf32> -> vector<16x96xf32>
    %c0_4 = arith.constant 0 : index
    %c0_5 = arith.constant 0 : index
    %5 = vector.load %arg2[%c0_4, %c0_5] : memref<96x32xf32, #tpu.memory_space<vmem>>, vector<96x32xf32>
    %cst_6 = arith.constant dense<0.000000e+00> : vector<16x32xf32>
    %6 = tpu.matmul %4, %5, %cst_6 {dimension_numbers = #tpu.dot_dimension_numbers<[1], [0], [0], [1], [0, 0, 1, 1], [], []>} : vector<16x96xf32>, vector<96x32xf32>, vector<16x32xf32> -> vector<16x32xf32>
    %c0_7 = arith.constant 0 : index
    %c0_8 = arith.constant 0 : index
    %7 = vector.load %arg3[%c0_7, %c0_8] : memref<1x32xf32, #tpu.memory_space<vmem>>, vector<1x32xf32>
    %8 = vector.broadcast %7 : vector<1x32xf32> to vector<16x32xf32>
    %9 = arith.addf %6, %8 : vector<16x32xf32>
    %cst_9 = arith.constant 0.000000e+00 : f32
    %10 = vector.broadcast %cst_9 : f32 to vector<16x32xf32>
    %11 = arith.maximumf %9, %10 : vector<16x32xf32>
    %c0_10 = arith.constant 0 : index
    %c0_11 = arith.constant 0 : index
    %12 = vector.load %arg4[%c0_10, %c0_11] : memref<16x32xf32, #tpu.memory_space<vmem>>, vector<16x32xf32>
    tpu.vector_store %arg4[%c0_10, %c0_11], %11 {strides = array<i32>} : memref<16x32xf32, #tpu.memory_space<vmem>>, vector<16x32xf32>,
    return
  }
}

</mosaic_0001>

<llo_original>
// kernel: tpu_custom_call.1
$region0: #{tpu_custom_call.1}
  #allocation0 [shape = 'u32[]', space=smem, size = 0x4, offset = 0x4, fixed_abs, tag = 'smem constant byte address 0x4 - core index']
  #allocation1 [shape = 'u32[144,128]{1,0:T(1,128)}', space=vmem, size = 0x12000, scoped, tag = 'internal scratch']
  %s0 = inlined_call_operand.vmem [shape: f32[16,32], index: 0, kind: input, shape index: {}]
  %s1 = inlined_call_operand.vmem [shape: f32[16,16], index: 1, kind: input, shape index: {}]
  %s2 = inlined_call_operand.vmem [shape: f32[96,32], index: 2, kind: input, shape index: {}]
  %s3 = inlined_call_operand.vmem [shape: f32[1,32], index: 3, kind: input, shape index: {}]
  %s4 = inlined_call_operand.hbm [shape: f32[16,32], index: 4, kind: output, shape index: {}]
  %s5 = sld [smem:[#allocation0]]
  $region26: #{tpu_custom_call.1} parent=0
    _
  %s7 = ssub.s32 1, %s5
  %s8 = scalar_select 0, %s7, %s5
  $region1: #{tpu_custom_call.1} parent=0
    #allocation2 [shape = 'u8[8192]{0}', space=vmem, size = 0x2000, scoped, tag = 'output window, operand 0, single buffered']
    #allocation3 [shape = 's32[1]{0}', space=sflag, size = 0x4, scoped, tag = 'scoped memory for tpu_custom_call.1']
    %9 = vsyncpa [#allocation3], 0
    // Predicated region
    $region2: #{tpu_custom_call.1} parent=1 // pred_check
      _
    $region3: #{tpu_custom_call.1} parent=1 // pred_check_branch
      %11 = sbr.rel (0) target = $region5
    $region4: #{tpu_custom_call.1} parent=1 // pred_region
      _
    $region5: #{tpu_custom_call.1} parent=1 // pred_fallthru
      _
    // Predicated region
    $region6: #{tpu_custom_call.1} parent=1 // pred_check
      _
    $region7: #{tpu_custom_call.1} parent=1 // pred_check_branch
      %13 = sbr.rel (0) target = $region9
    $region8: #{tpu_custom_call.1} parent=1 // pred_region
      _
    $region9: #{tpu_custom_call.1} parent=1 // pred_fallthru
      _
    // Predicated region
    $region10: #{tpu_custom_call.1} parent=1 // pred_check
      _
    $region11: #{tpu_custom_call.1} parent=1 // pred_check_branch
      %15 = sbr.rel (0) target = $region13
    $region12: #{tpu_custom_call.1} parent=1 // pred_region
      _
    $region13: #{tpu_custom_call.1} parent=1 // pred_fallthru
      _
    // Predicated region
    $region14: #{tpu_custom_call.1} parent=1 // pred_check
      _
    $region15: #{tpu_custom_call.1} parent=1 // pred_check_branch
      %17 = sbr.rel (0) target = $region17
    $region16: #{tpu_custom_call.1} parent=1 // pred_region
      _
    $region17: #{tpu_custom_call.1} parent=1 // pred_fallthru
      _
    %v18 = vld [vmem:[%s1] sm:$0xff]
    %v19 = vld [vmem:[%s1 + $0x8] sm:$0xff]
    %v20 = vld [vmem:[%s0] sm:$0xff]
    %v21 = vld [vmem:[%s0 + $0x8] sm:$0xff]
    %vm22 = vcmask 130048
    %v24 = vsel %vm22, %v18, 0
    %v27 = vsel %vm22, %v19, 0
    %29 = vmatprep.subr.mxu0 0.0
    %30 = vmatpush1.msra.mxu0 %v20
    %31 = vmatprep.subr.mxu0 0.0
    %32 = vmatpush1.msra.mxu0 %v21
    %33 = vmatprep.subr.mxu0 0.0
    %34 = vmatpush1.msra.mxu0 0.0
    %35 = vmatprep.subr.mxu0 0.0
    %36 = vmatpush1.msra.mxu0 0.0
    %37 = vmatprep.subr.mxu0 0.0
    %38 = vmatpush1.msra.mxu0 0.0
    %39 = vmatprep.subr.mxu0 0.0
    %40 = vmatpush1.msra.mxu0 0.0
    %41 = vmatprep.subr.mxu0 0.0
    %42 = vmatpush1.msra.mxu0 0.0
    %43 = vmatprep.subr.mxu0 0.0
    %44 = vmatpush1.msra.mxu0 0.0
    %45 = vmatprep.subr.mxu0 0.0
    %46 = vmatpush1.msra.mxu0 0.0
    %47 = vmatprep.subr.mxu0 0.0
    %48 = vmatpush1.msra.mxu0 0.0
    %49 = vmatprep.subr.mxu0 0.0
    %50 = vmatpush1.msra.mxu0 0.0
    %51 = vmatprep.subr.mxu0 0.0
    %52 = vmatpush1.msra.mxu0 0.0
    %53 = vmatprep.subr.mxu0 0.0
    %54 = vmatpush1.msra.mxu0 0.0
    %55 = vmatprep.subr.mxu0 0.0
    %56 = vmatpush1.msra.mxu0 0.0
    %57 = vmatprep.subr.mxu0 0.0
    %58 = vmatpush1.msra.mxu0 0.0
    %59 = vmatprep.subr.mxu0 0.0
    %60 = vmatpush1.msra.mxu0 0.0
    %61 = vmatprep.subr.mxu0 0.0
    %62 = vmatpush1.msra.mxu0 0.0
    %63 = vmatprep.subr.mxu0 0.0
    %64 = vmatpush1.msra.mxu0 0.0
    %65 = vmatprep.subr.mxu0 0.0
    %66 = vmatpush1.msra.mxu0 0.0
    %67 = vmatprep.subr.mxu0 0.0
    %68 = vmatpush1.msra.mxu0 0.0
    %69 = vmatprep.subr.mxu0 0.0
    %70 = vmatpush1.msra.mxu0 0.0
    %71 = vmatprep.subr.mxu0 0.0
    %72 = vmatpush1.msra.mxu0 0.0
    %73 = vmatprep.subr.mxu0 0.0
    %74 = vmatpush1.msra.mxu0 0.0
    %75 = vmatprep.subr.mxu0 0.0
    %76 = vmatpush1.msra.mxu0 0.0
    %77 = vmatprep.subr.mxu0 0.0
    %78 = vmatpush1.msra.mxu0 0.0
    %79 = vmatprep.subr.mxu0 0.0
    %80 = vmatpush1.msra.mxu0 0.0
    %81 = vmatprep.subr.mxu0 0.0
    %82 = vmatpush1.msra.mxu0 0.0
    %83 = vmatprep.subr.mxu0 0.0
    %84 = vmatpush1.msra.mxu0 0.0
    %85 = vmatprep.subr.mxu0 0.0
    %86 = vmatpush1.msra.mxu0 0.0
    %87 = vmatprep.subr.mxu0 0.0
    %88 = vmatpush1.msra.mxu0 0.0
    %89 = vmatprep.subr.mxu0 0.0
    %90 = vmatpush1.msra.mxu0 0.0
    %91 = vmatprep.subr.mxu0 0.0
    %92 = vmatpush1.msra.mxu0 0.0
    %93 = vmatprep.mubr.f32.mxu0 0.0
    %94 = vmatmul.mubr.f32.gmra.mrb[0].mxu0 %v24
    %v95 = vpop.f32.mrb[0].mxu0
    %v96 = vadd.f32 0.0, %v95
    %v97 = vpop.f32.mrb[0].mxu0
    %98 = vmatprep.mubr.f32.mxu0 0.0
    %99 = vmatmul.mubr.f32.gmra.mrb[0].mxu0 %v27
    %v100 = vpop.f32.mrb[0].mxu0
    %v101 = vadd.f32 0.0, %v100
    %v102 = vpop.f32.mrb[0].mxu0
    %103 = vdwg.mxu0
    %104 = vmatprep.subr.mxu0 0.0
    %105 = vmatpush1.msra.mxu0 %v96
    %106 = vmatprep.subr.mxu0 0.0
    %107 = vmatpush1.msra.mxu0 %v101
    %108 = vmatprep.subr.mxu0 0.0
    %109 = vmatpush1.msra.mxu0 0.0
    %110 = vmatprep.subr.mxu0 0.0
    %111 = vmatpush1.msra.mxu0 0.0
    %112 = vmatprep.subr.mxu0 0.0
    %113 = vmatpush1.msra.mxu0 0.0
    %114 = vmatprep.subr.mxu0 0.0
    %115 = vmatpush1.msra.mxu0 0.0
    %116 = vmatprep.subr.mxu0 0.0
    %117 = vmatpush1.msra.mxu0 0.0
    %118 = vmatprep.subr.mxu0 0.0
    %119 = vmatpush1.msra.mxu0 0.0
    %120 = vmatprep.subr.mxu0 0.0
    %121 = vmatpush1.msra.mxu0 0.0
    %122 = vmatprep.subr.mxu0 0.0
    %123 = vmatpush1.msra.mxu0 0.0
    %124 = vmatprep.subr.mxu0 0.0
    %125 = vmatpush1.msra.mxu0 0.0
    %126 = vmatprep.subr.mxu0 0.0
    %127 = vmatpush1.msra.mxu0 0.0
    %128 = vmatprep.subr.mxu0 0.0
    %129 = vmatpush1.msra.mxu0 0.0
    %130 = vmatprep.subr.mxu0 0.0
    %131 = vmatpush1.msra.mxu0 0.0
    %132 = vmatprep.subr.mxu0 0.0
    %133 = vmatpush1.msra.mxu0 0.0
    %134 = vmatprep.subr.mxu0 0.0
    %135 = vmatpush1.msra.mxu0 0.0
    %136 = vmatprep.subr.mxu0 0.0
    %137 = vmatpush1.msra.mxu0 0.0
    %138 = vmatprep.subr.mxu0 0.0
    %139 = vmatpush1.msra.mxu0 0.0
    %140 = vmatprep.subr.mxu0 0.0
    %141 = vmatpush1.msra.mxu0 0.0
    %142 = vmatprep.subr.mxu0 0.0
    %143 = vmatpush1.msra.mxu0 0.0
    %144 = vmatprep.subr.mxu0 0.0
    %145 = vmatpush1.msra.mxu0 0.0
    %146 = vmatprep.subr.mxu0 0.0
    %147 = vmatpush1.msra.mxu0 0.0
    %148 = vmatprep.subr.mxu0 0.0
    %149 = vmatpush1.msra.mxu0 0.0
    %150 = vmatprep.subr.mxu0 0.0
    %151 = vmatpush1.msra.mxu0 0.0
    %152 = vmatprep.subr.mxu0 0.0
    %153 = vmatpush1.msra.mxu0 0.0
    %154 = vmatprep.subr.mxu0 0.0
    %155 = vmatpush1.msra.mxu0 0.0
    %156 = vmatprep.subr.mxu0 0.0
    %157 = vmatpush1.msra.mxu0 0.0
    %158 = vmatprep.subr.mxu0 0.0
    %159 = vmatpush1.msra.mxu0 0.0
    %160 = vmatprep.subr.mxu0 0.0
    %161 = vmatpush1.msra.mxu0 0.0
    %162 = vmatprep.subr.mxu0 0.0
    %163 = vmatpush1.msra.mxu0 0.0
    %164 = vmatprep.subr.mxu0 0.0
    %165 = vmatpush1.msra.mxu0 0.0
    %166 = vmatprep.subr.mxu0 0.0
    %167 = vmatpush1.msra.mxu0 0.0
    %168 = vmatprep.mubr.f32.mxu0 0.0
    %169 = vmatmul.mubr.f32.gmra.mrb[0].mxu0 %v24
    %v170 = vpop.f32.mrb[0].mxu0
    %v171 = vadd.f32 0.0, %v170
    %v172 = vpop.f32.mrb[0].mxu0
    %173 = vmatprep.mubr.f32.mxu0 0.0
    %174 = vmatmul.mubr.f32.gmra.mrb[0].mxu0 %v27
    %v175 = vpop.f32.mrb[0].mxu0
    %v176 = vadd.f32 0.0, %v175
    %v177 = vpop.f32.mrb[0].mxu0
    %178 = vdwg.mxu0
    %181 = vrot.lane.b32.xlu0 %v96, 32
    %v182 = vpop.permute.xlu0 %181
    %183 = vrot.lane.b32.xlu0 %v101, 32
    %v184 = vpop.permute.xlu0 %183
    %189 = vrot.lane.b32.xlu0 %v171, 64
    %v190 = vpop.permute.xlu0 %189
    %191 = vrot.lane.b32.xlu0 %v176, 64
    %v192 = vpop.permute.xlu0 %191
    %vm195 = vcmask 261120
    %v196 = vsel %vm195, %v20, %v182
    %v197 = vsel %vm195, %v21, %v184
    %vm198 = vcmask 523264
    %v199 = vsel %vm198, %v196, %v190
    %v200 = vsel %vm198, %v197, %v192
    %v201 = vld [vmem:[%s2] sm:$0xff]
    %v202 = vld [vmem:[%s2 + $0x8] sm:$0xff]
    %v203 = vld [vmem:[%s2 + $0x10] sm:$0xff]
    %v204 = vld [vmem:[%s2 + $0x18] sm:$0xff]
    %v205 = vld [vmem:[%s2 + $0x20] sm:$0xff]
    %v206 = vld [vmem:[%s2 + $0x28] sm:$0xff]
    %v207 = vld [vmem:[%s2 + $0x30] sm:$0xff]
    %v208 = vld [vmem:[%s2 + $0x38] sm:$0xff]
    %v209 = vld [vmem:[%s2 + $0x40] sm:$0xff]
    %v210 = vld [vmem:[%s2 + $0x48] sm:$0xff]
    %v211 = vld [vmem:[%s2 + $0x50] sm:$0xff]
    %v212 = vld [vmem:[%s2 + $0x58] sm:$0xff]
    %v213 = vld [vmem:[%s3] sm:$0x1]
    %v215 = vlaneseq
    %v216 = vshrl.u32 %v215, 7
    %v217 = vsub.s32 0, %v216
    %v218 = vrot.slane %v213, %v217
    %vm220 = vcmask 785408
    %v222 = vsel %vm220, %v199, 0
    %v225 = vsel %vm220, %v200, 0
    %227 = vmatprep.subr.mxu0 0.0
    %228 = vmatpush1.msra.mxu0 %v201
    %229 = vmatprep.subr.mxu0 0.0
    %230 = vmatpush1.msra.mxu0 %v202
    %231 = vmatprep.subr.mxu0 0.0
    %232 = vmatpush1.msra.mxu0 %v203
    %233 = vmatprep.subr.mxu0 0.0
    %234 = vmatpush1.msra.mxu0 %v204
    %235 = vmatprep.subr.mxu0 0.0
    %236 = vmatpush1.msra.mxu0 %v205
    %237 = vmatprep.subr.mxu0 0.0
    %238 = vmatpush1.msra.mxu0 %v206
    %239 = vmatprep.subr.mxu0 0.0
    %240 = vmatpush1.msra.mxu0 %v207
    %241 = vmatprep.subr.mxu0 0.0
    %242 = vmatpush1.msra.mxu0 %v208
    %243 = vmatprep.subr.mxu0 0.0
    %244 = vmatpush1.msra.mxu0 %v209
    %245 = vmatprep.subr.mxu0 0.0
    %246 = vmatpush1.msra.mxu0 %v210
    %247 = vmatprep.subr.mxu0 0.0
    %248 = vmatpush1.msra.mxu0 %v211
    %249 = vmatprep.subr.mxu0 0.0
    %250 = vmatpush1.msra.mxu0 %v212
    %251 = vmatprep.subr.mxu0 0.0
    %252 = vmatpush1.msra.mxu0 0.0
    %253 = vmatprep.subr.mxu0 0.0
    %254 = vmatpush1.msra.mxu0 0.0
    %255 = vmatprep.subr.mxu0 0.0
    %256 = vmatpush1.msra.mxu0 0.0
    %257 = vmatprep.subr.mxu0 0.0
    %258 = vmatpush1.msra.mxu0 0.0
    %259 = vmatprep.subr.mxu0 0.0
    %260 = vmatpush1.msra.mxu0 0.0
    %261 = vmatprep.subr.mxu0 0.0
    %262 = vmatpush1.msra.mxu0 0.0
    %263 = vmatprep.subr.mxu0 0.0
    %264 = vmatpush1.msra.mxu0 0.0
    %265 = vmatprep.subr.mxu0 0.0
    %266 = vmatpush1.msra.mxu0 0.0
    %267 = vmatprep.subr.mxu0 0.0
    %268 = vmatpush1.msra.mxu0 0.0
    %269 = vmatprep.subr.mxu0 0.0
    %270 = vmatpush1.msra.mxu0 0.0
    %271 = vmatprep.subr.mxu0 0.0
    %272 = vmatpush1.msra.mxu0 0.0
    %273 = vmatprep.subr.mxu0 0.0
    %274 = vmatpush1.msra.mxu0 0.0
    %275 = vmatprep.subr.mxu0 0.0
    %276 = vmatpush1.msra.mxu0 0.0
    %277 = vmatprep.subr.mxu0 0.0
    %278 = vmatpush1.msra.mxu0 0.0
    %279 = vmatprep.subr.mxu0 0.0
    %280 = vmatpush1.msra.mxu0 0.0
    %281 = vmatprep.subr.mxu0 0.0
    %282 = vmatpush1.msra.mxu0 0.0
    %283 = vmatprep.subr.mxu0 0.0
    %284 = vmatpush1.msra.mxu0 0.0
    %285 = vmatprep.subr.mxu0 0.0
    %286 = vmatpush1.msra.mxu0 0.0
    %287 = vmatprep.subr.mxu0 0.0
    %288 = vmatpush1.msra.mxu0 0.0
    %289 = vmatprep.subr.mxu0 0.0
    %290 = vmatpush1.msra.mxu0 0.0
    %291 = vmatprep.mubr.f32.mxu0 0.0
    %292 = vmatmul.mubr.f32.gmra.mrb[0].mxu0 %v222
    %v293 = vpop.f32.mrb[0].mxu0
    %v294 = vadd.f32 %v218, %v293
    %v295 = vpop.f32.mrb[0].mxu0
    %296 = vmatprep.mubr.f32.mxu0 0.0
    %297 = vmatmul.mubr.f32.gmra.mrb[0].mxu0 %v225
    %v298 = vpop.f32.mrb[0].mxu0
    %v299 = vadd.f32 %v218, %v298
    %v300 = vpop.f32.mrb[0].mxu0
    %301 = vdwg.mxu0
    %v302 = vmax.f32 %v294, 0.0
    %v303 = vmax.f32 %v299, 0.0
    %304 = vst.msk [vmem:[#allocation2] sm:$0xff] %vm195, %v302
    %305 = vst.msk [vmem:[#allocation2 + $0x8] sm:$0xff] %vm195, %v303
    // Predicated region
    $region18: #{tpu_custom_call.1} parent=1 // pred_check
      _
    $region19: #{tpu_custom_call.1} parent=1 // pred_check_branch
      %307 = sbr.rel (0) target = $region21
    $region20: #{tpu_custom_call.1} parent=1 // pred_region
      %s309 = ssub.s32 256, 256
      %310 = vsyncadd [#allocation3], %s309
      %s311 = sshll.u32 [#allocation2], 4
      %s312 = int_to_ptr.vmem [resolvable:$true] %s311
      %317 = dma.vmem_to_hbm [thread:$0]  %s312, 256, %s4, [#allocation3], 128, 128, 8
    $region21: #{tpu_custom_call.1} parent=1 // pred_fallthru
      _
    // Predicated region
    $region22: #{tpu_custom_call.1} parent=1 // pred_check
      _
    $region23: #{tpu_custom_call.1} parent=1 // pred_check_branch
      %319 = sbr.rel (0) target = $region25
    $region24: #{tpu_custom_call.1} parent=1 // pred_region
      %320 = dma.done [#allocation3], 256
    $region25: #{tpu_custom_call.1} parent=1 // pred_fallthru
      _
    %321 = vsyncpa [#allocation3], 1

</llo_original>
